<compile_context>
chip_gen: v5e
topology: v5e:2x2
jax: 0.10.0
libtpu: 0.0.40
codegen_flags: <defaults>
</compile_context>

<pallas_src>
import functools

import jax
import jax.numpy as jnp
import numpy as np
from jax.experimental import pallas as pl
from jax.experimental.pallas import tpu as pltpu


# ----------------------------------------------------------------------------
# Fused kernel: upsample (ConvTranspose2d k=2 s=2) + concat + conv3x3+BN x2
# ----------------------------------------------------------------------------
def fused_doubleupconv_kernel(
    xnn_ref,    # (1, Cin,   L)   2x NN-replicated x, NB images packed on lanes
    skip_ref,   # (1, Cskip, L)   skip connection,   NB images packed on lanes
    pmask_ref,  # (4, L)          phase (row%2, col%2) one-hot masks
    tmask_ref,  # (9, L)          3x3-tap boundary-validity masks
    wup_ref,    # (4*Cout, Cin)   stacked per-phase transpose-conv weights
    bup_ref,    # (Cout, 1)       transpose-conv bias
    w1_ref,     # (Cout, 9*Ccat)  conv1 weights, taps folded into K
    w2_ref,     # (Cout, 9*Cout)  conv2 weights, taps folded into K
    s1_ref, t1_ref,   # (Cout, 1) folded BN1 scale / shift
    s2_ref, t2_ref,   # (Cout, 1) folded BN2 scale / shift
    out_ref,    # (1, Cout, L)
    *, W2, Cout,
):
    L = xnn_ref.shape[-1]
    xnn = xnn_ref[0]                       # (Cin,   L)
    skip = skip_ref[0]                     # (Cskip, L)
    pmask = pmask_ref[...]                 # (4, L)
    tmask = tmask_ref[...]                 # (9, L)

    # ---------------- ConvTranspose2d(k=2, s=2, bias=True) ----------------
    # ONE stacked matmul over all 4 (a,b) phases, then select the right phase
    # per output pixel with the precomputed parity masks (rev #2, #11).
    phases = jnp.dot(wup_ref[...], xnn,
                     preferred_element_type=jnp.float32)        # (4*Cout, L)
    up = (phases[0 * Cout:1 * Cout] * pmask[0:1]
          + phases[1 * Cout:2 * Cout] * pmask[1:2]
          + phases[2 * Cout:3 * Cout] * pmask[2:3]
          + phases[3 * Cout:4 * Cout] * pmask[3:4]) + bup_ref[...]  # (Cout, L)

    # concat([upsampled, skip], channel axis) as a VMEM value (no scratch).
    cat = jnp.concatenate([up.astype(skip.dtype), skip], axis=0)    # (Ccat, L)

    # ------- 3x3 conv (stride 1, pad 1, no bias) + BN as ONE matmul --------
    def conv3x3_bn(src, w_flat, scale, shift):
        parts = []
        for t in range(9):
            dy, dx = t // 3, t % 3
            off = (dy - 1) * W2 + (dx - 1)     # flat-lane offset of this tap
            # patch[p] = src[p + off] (circular roll); out-of-image lanes are
            # zeroed by tmask, which also kills cross-image wrap-around when
            # several images are packed along the lane axis (rev #4, #6).
            shifted = src if off == 0 else pltpu.roll(src, shift=(-off) % L,
                                                      axis=1)
            if t != 4:                          # centre tap: no mask needed
                shifted = shifted * tmask[t:t + 1, :]
            parts.append(shifted)
        im = jnp.concatenate(parts, axis=0)     # (9*C_src, L) tap-im2col
        y = jnp.dot(w_flat, im, preferred_element_type=jnp.float32)
        return y * scale + shift                # folded BN; activation = Identity

    y1 = conv3x3_bn(cat, w1_ref[...], s1_ref[...], t1_ref[...])
    y2 = conv3x3_bn(y1.astype(skip.dtype), w2_ref[...], s2_ref[...], t2_ref[...])
    out_ref[0] = y2.astype(out_ref.dtype)       # lane-dense (Cout, L) store


# ----------------------------------------------------------------------------
# Wrapper
# ----------------------------------------------------------------------------
def fold_bn(gamma, beta, mean, var, eps=1e-5):
    scale = gamma / jnp.sqrt(var + eps)
    shift = beta - mean * scale
    return scale, shift


def double_up_conv_forward(params, x_nchw, x_skip_nchw, *,
                           batch_block=2, compute_dtype=jnp.float32):
    N, Cin, H, W = x_nchw.shape
    Cout = params["up_w"].shape[1]
    Cskip = x_skip_nchw.shape[1]
    Ccat = Cout + Cskip
    H2, W2 = 2 * H, 2 * W
    HW2 = H2 * W2
    assert (H2, W2) == x_skip_nchw.shape[2:], "x and x_skip have different H and W"
    assert Ccat == params["conv1_w"].shape[2]

    # Batch packing along the lane axis (rev #6).  On v7x keep N//NB >= 2 so
    # both TensorCores get a "parallel" grid step (rev #7).
    NB = batch_block if (batch_block and N % batch_block == 0) else 1
    G = N // NB
    L = NB * HW2

    # NN 2x replication of x (phase-dependent channel mixing is in-kernel).
    # TODO(synk): rev #3 — replace with native-resolution x + in-VMEM interleave.
    x_nn = jnp.repeat(jnp.repeat(x_nchw, 2, axis=2), 2, axis=3).reshape(N, Cin, HW2)
    skip_flat = x_skip_nchw.reshape(N, Cskip, HW2)

    def pack(a, C):          # (N, C, HW2) -> (G, C, NB*HW2), images on lanes
        return a.reshape(G, NB, C, HW2).transpose(0, 2, 1, 3).reshape(G, C, L)

    x_nn_p = pack(x_nn, Cin).astype(compute_dtype)
    skip_p = pack(skip_flat, Cskip).astype(compute_dtype)

    # Precomputed position masks (rev #11): phase parity + tap validity.
    q = np.arange(HW2)
    r = np.tile(q // W2, NB)                 # local row within each image
    c = np.tile(q % W2, NB)                  # local col within each image
    pmask = np.stack([((r % 2) == a) & ((c % 2) == b)
                      for a in range(2) for b in range(2)]).astype(np.float32)
    tmask = np.stack([(r + dy - 1 >= 0) & (r + dy - 1 < H2)
                      & (c + dx - 1 >= 0) & (c + dx - 1 < W2)
                      for dy in range(3) for dx in range(3)]).astype(np.float32)
    pmask = jnp.asarray(pmask).astype(compute_dtype)    # (4, L)
    tmask = jnp.asarray(tmask).astype(compute_dtype)    # (9, L)

    # Weight packing (tiny, trace-time only).
    up_w = params["up_w"]                                        # (Cin, Cout, 2, 2)
    wup = jnp.stack([up_w[:, :, a, b].T
                     for a in range(2) for b in range(2)])       # (4, Cout, Cin)
    wup = wup.reshape(4 * Cout, Cin).astype(compute_dtype)       # row = (a*2+b)*Cout + o
    bup = params["up_b"].reshape(Cout, 1).astype(jnp.float32)

    w1 = jnp.stack([params["conv1_w"][dy, dx].T
                    for dy in range(3) for dx in range(3)])      # (9, Cout, Ccat)
    w1 = jnp.transpose(w1, (1, 0, 2)).reshape(Cout, 9 * Ccat).astype(compute_dtype)
    w2 = jnp.stack([params["conv2_w"][dy, dx].T
                    for dy in range(3) for dx in range(3)])      # (9, Cout, Cout)
    w2 = jnp.transpose(w2, (1, 0, 2)).reshape(Cout, 9 * Cout).astype(compute_dtype)

    s1, t1 = fold_bn(params["bn1_g"], params["bn1_b"], params["bn1_m"], params["bn1_v"])
    s2, t2 = fold_bn(params["bn2_g"], params["bn2_b"], params["bn2_m"], params["bn2_v"])
    s1 = s1.reshape(Cout, 1).astype(jnp.float32)
    t1 = t1.reshape(Cout, 1).astype(jnp.float32)
    s2 = s2.reshape(Cout, 1).astype(jnp.float32)
    t2 = t2.reshape(Cout, 1).astype(jnp.float32)

    kernel = functools.partial(fused_doubleupconv_kernel, W2=W2, Cout=Cout)
    out = pl.pallas_call(
        kernel,
        out_shape=jax.ShapeDtypeStruct((G, Cout, L), jnp.float32),
        grid=(G,),
        in_specs=[
            pl.BlockSpec((1, Cin, L), lambda g: (g, 0, 0)),
            pl.BlockSpec((1, Cskip, L), lambda g: (g, 0, 0)),
            pl.BlockSpec((4, L), lambda g: (0, 0)),
            pl.BlockSpec((9, L), lambda g: (0, 0)),
            pl.BlockSpec((4 * Cout, Cin), lambda g: (0, 0)),
            pl.BlockSpec((Cout, 1), lambda g: (0, 0)),
            pl.BlockSpec((Cout, 9 * Ccat), lambda g: (0, 0)),
            pl.BlockSpec((Cout, 9 * Cout), lambda g: (0, 0)),
            pl.BlockSpec((Cout, 1), lambda g: (0, 0)),
            pl.BlockSpec((Cout, 1), lambda g: (0, 0)),
            pl.BlockSpec((Cout, 1), lambda g: (0, 0)),
            pl.BlockSpec((Cout, 1), lambda g: (0, 0)),
        ],
        out_specs=pl.BlockSpec((1, Cout, L), lambda g: (g, 0, 0)),
        compiler_params=pltpu.CompilerParams(dimension_semantics=("parallel",)),
    )(x_nn_p, skip_p, pmask, tmask, wup, bup, w1, w2, s1, t1, s2, t2)

    # Unpack lane-packed batch back to NCHW.
    out = out.reshape(G, Cout, NB, HW2).transpose(0, 2, 1, 3)
    return out.reshape(N, Cout, H2, W2)


# ----------------------------------------------------------------------------
# Pure-JAX reference (for correctness check)
# ----------------------------------------------------------------------------
def reference_forward(params, x_nchw, x_skip_nchw):
    x = jnp.transpose(x_nchw, (0, 2, 3, 1))
    x_skip = jnp.transpose(x_skip_nchw, (0, 2, 3, 1))

    # conv-transpose reference via einsum
    up = jnp.einsum("nhwc,cokl->nhwklo", x, params["up_w"]) + params["up_b"]
    N, H, W, _, _, Cout = up.shape
    up = up.transpose(0, 1, 3, 2, 4, 5).reshape(N, 2 * H, 2 * W, Cout)

    x = jnp.concatenate([up, x_skip], axis=-1)

    def conv_bn(x, w_hwio, g, b, m, v):
        y = jax.lax.conv_general_dilated(
            x, w_hwio, window_strides=(1, 1), padding="SAME",
            dimension_numbers=("NHWC", "HWIO", "NHWC"))
        s, sh = fold_bn(g, b, m, v)
        return y * s + sh

    x = conv_bn(x, params["conv1_w"], params["bn1_g"], params["bn1_b"],
                params["bn1_m"], params["bn1_v"])
    x = conv_bn(x, params["conv2_w"], params["bn2_g"], params["bn2_b"],
                params["bn2_m"], params["bn2_v"])
    return jnp.transpose(x, (0, 3, 1, 2))


if __name__ == "__main__":
    key = jax.random.PRNGKey(0)
    keys = jax.random.split(key, 16)

    # Small shapes: in_channels=8, out_channels=4, so skip has 8-4=4 channels.
    N, Cin, Cout = 2, 8, 4
    H = W = 8  # x spatial; skip spatial = 2H = 16

    x = jax.random.normal(keys[0], (N, Cin, H, W), jnp.float32)            # NCHW
    x_skip = jax.random.normal(keys[1], (N, Cin - Cout, 2 * H, 2 * W), jnp.float32)

    params = {
        # ConvTranspose2d weight: (Cin, Cout, 2, 2), bias: (Cout,)
        "up_w": 0.1 * jax.random.normal(keys[2], (Cin, Cout, 2, 2), jnp.float32),
        "up_b": 0.1 * jax.random.normal(keys[3], (Cout,), jnp.float32),
        # Conv1: (3,3,Cin,Cout) in HWIO, no bias
        "conv1_w": 0.1 * jax.random.normal(keys[4], (3, 3, Cin, Cout), jnp.float32),
        "bn1_g": 1.0 + 0.1 * jax.random.normal(keys[5], (Cout,), jnp.float32),
        "bn1_b": 0.1 * jax.random.normal(keys[6], (Cout,), jnp.float32),
        "bn1_m": 0.1 * jax.random.normal(keys[7], (Cout,), jnp.float32),
        "bn1_v": 1.0 + 0.1 * jnp.abs(jax.random.normal(keys[8], (Cout,), jnp.float32)),
        # Conv2: (3,3,Cout,Cout)
        "conv2_w": 0.1 * jax.random.normal(keys[9], (3, 3, Cout, Cout), jnp.float32),
        "bn2_g": 1.0 + 0.1 * jax.random.normal(keys[10], (Cout,), jnp.float32),
        "bn2_b": 0.1 * jax.random.normal(keys[11], (Cout,), jnp.float32),
        "bn2_m": 0.1 * jax.random.normal(keys[12], (Cout,), jnp.float32),
        "bn2_v": 1.0 + 0.1 * jnp.abs(jax.random.normal(keys[13], (Cout,), jnp.float32)),
    }

    out = double_up_conv_forward(params, x, x_skip, batch_block=2,
                                 compute_dtype=jnp.float32)
    out = jax.block_until_ready(out)

    ref = jax.block_until_ready(reference_forward(params, x, x_skip))
    assert out.shape == (N, Cout, 2 * H, 2 * W), out.shape
    np.testing.assert_allclose(np.asarray(out), np.asarray(ref), atol=1e-4, rtol=1e-4)

    print("KERNEL_OK")
</pallas_src>

<mosaic_0001>
module attributes {stable_mosaic.version = 11 : i64} {
  func.func @fused_doubleupconv_kernel(%arg0: i32, %arg1: memref<1x8x512xf32, #tpu.memory_space<vmem>>, %arg2: memref<1x4x512xf32, #tpu.memory_space<vmem>>, %arg3: memref<4x512xf32, #tpu.memory_space<vmem>>, %arg4: memref<9x512xf32, #tpu.memory_space<vmem>>, %arg5: memref<16x8xf32, #tpu.memory_space<vmem>>, %arg6: memref<4x1xf32, #tpu.memory_space<vmem>>, %arg7: memref<4x72xf32, #tpu.memory_space<vmem>>, %arg8: memref<4x36xf32, #tpu.memory_space<vmem>>, %arg9: memref<4x1xf32, #tpu.memory_space<vmem>>, %arg10: memref<4x1xf32, #tpu.memory_space<vmem>>, %arg11: memref<4x1xf32, #tpu.memory_space<vmem>>, %arg12: memref<4x1xf32, #tpu.memory_space<vmem>>, %arg13: memref<1x4x512xf32, #tpu.memory_space<vmem>>) attributes {dimension_semantics = [#tpu.dimension_semantics<parallel>], iteration_bounds = array<i64: 1>, scalar_prefetch = 0 : i64, scratch_operands = 0 : i64, tpu.core_type = #tpu.core_type<tc>, window_params = [{transform_indices = @transform_0, window_bounds = array<i64: 1, 8, 512>}, {transform_indices = @transform_1, window_bounds = array<i64: 1, 4, 512>}, {pipeline_mode = #tpu.pipeline_mode<synchronous>, transform_indices = @transform_2, window_bounds = array<i64: 4, 512>}, {pipeline_mode = #tpu.pipeline_mode<synchronous>, transform_indices = @transform_3, window_bounds = array<i64: 9, 512>}, {pipeline_mode = #tpu.pipeline_mode<synchronous>, transform_indices = @transform_4, window_bounds = array<i64: 16, 8>}, {pipeline_mode = #tpu.pipeline_mode<synchronous>, transform_indices = @transform_5, window_bounds = array<i64: 4, 1>}, {pipeline_mode = #tpu.pipeline_mode<synchronous>, transform_indices = @transform_6, window_bounds = array<i64: 4, 72>}, {pipeline_mode = #tpu.pipeline_mode<synchronous>, transform_indices = @transform_7, window_bounds = array<i64: 4, 36>}, {pipeline_mode = #tpu.pipeline_mode<synchronous>, transform_indices = @transform_8, window_bounds = array<i64: 4, 1>}, {pipeline_mode = #tpu.pipeline_mode<synchronous>, transform_indices = @transform_9, window_bounds = array<i64: 4, 1>}, {pipeline_mode = #tpu.pipeline_mode<synchronous>, transform_indices = @transform_10, window_bounds = array<i64: 4, 1>}, {pipeline_mode = #tpu.pipeline_mode<synchronous>, transform_indices = @transform_11, window_bounds = array<i64: 4, 1>}, {transform_indices = @transform_12, window_bounds = array<i64: 1, 4, 512>}]} {
    %c0 = arith.constant 0 : index
    %c0_0 = arith.constant 0 : index
    %c0_1 = arith.constant 0 : index
    %0 = vector.load %arg1[%c0, %c0_0, %c0_1] : memref<1x8x512xf32, #tpu.memory_space<vmem>>, vector<1x8x512xf32>
    %1 = vector.shape_cast %0 : vector<1x8x512xf32> to vector<8x512xf32>
    %c0_2 = arith.constant 0 : index
    %c0_3 = arith.constant 0 : index
    %c0_4 = arith.constant 0 : index
    %2 = vector.load %arg2[%c0_2, %c0_3, %c0_4] : memref<1x4x512xf32, #tpu.memory_space<vmem>>, vector<1x4x512xf32>
    %3 = vector.shape_cast %2 : vector<1x4x512xf32> to vector<4x512xf32>
    %c0_5 = arith.constant 0 : index
    %c0_6 = arith.constant 0 : index
    %4 = vector.load %arg3[%c0_5, %c0_6] : memref<4x512xf32, #tpu.memory_space<vmem>>, vector<4x512xf32>
    %c0_7 = arith.constant 0 : index
    %c0_8 = arith.constant 0 : index
    %5 = vector.load %arg4[%c0_7, %c0_8] : memref<9x512xf32, #tpu.memory_space<vmem>>, vector<9x512xf32>
    %c0_9 = arith.constant 0 : index
    %c0_10 = arith.constant 0 : index
    %6 = vector.load %arg5[%c0_9, %c0_10] : memref<16x8xf32, #tpu.memory_space<vmem>>, vector<16x8xf32>
    %cst = arith.constant dense<0.000000e+00> : vector<16x512xf32>
    %7 = tpu.matmul %6, %1, %cst {dimension_numbers = #tpu.dot_dimension_numbers<[1], [0], [0], [1], [0, 0, 1, 1], [], []>} : vector<16x8xf32>, vector<8x512xf32>, vector<16x512xf32> -> vector<16x512xf32>
    %8 = vector.extract_strided_slice %7 {offsets = [0, 0], sizes = [4, 512], strides = [1, 1]} : vector<16x512xf32> to vector<4x512xf32>
    %9 = vector.extract_strided_slice %4 {offsets = [0, 0], sizes = [1, 512], strides = [1, 1]} : vector<4x512xf32> to vector<1x512xf32>
    %10 = vector.broadcast %9 : vector<1x512xf32> to vector<4x512xf32>
    %11 = arith.mulf %8, %10 : vector<4x512xf32>
    %12 = vector.extract_strided_slice %7 {offsets = [4, 0], sizes = [4, 512], strides = [1, 1]} : vector<16x512xf32> to vector<4x512xf32>
    %13 = vector.extract_strided_slice %4 {offsets = [1, 0], sizes = [1, 512], strides = [1, 1]} : vector<4x512xf32> to vector<1x512xf32>
    %14 = vector.broadcast %13 : vector<1x512xf32> to vector<4x512xf32>
    %15 = arith.mulf %12, %14 : vector<4x512xf32>
    %16 = arith.addf %11, %15 : vector<4x512xf32>
    %17 = vector.extract_strided_slice %7 {offsets = [8, 0], sizes = [4, 512], strides = [1, 1]} : vector<16x512xf32> to vector<4x512xf32>
    %18 = vector.extract_strided_slice %4 {offsets = [2, 0], sizes = [1, 512], strides = [1, 1]} : vector<4x512xf32> to vector<1x512xf32>
    %19 = vector.broadcast %18 : vector<1x512xf32> to vector<4x512xf32>
    %20 = arith.mulf %17, %19 : vector<4x512xf32>
    %21 = arith.addf %16, %20 : vector<4x512xf32>
    %22 = vector.extract_strided_slice %7 {offsets = [12, 0], sizes = [4, 512], strides = [1, 1]} : vector<16x512xf32> to vector<4x512xf32>
    %23 = vector.extract_strided_slice %4 {offsets = [3, 0], sizes = [1, 512], strides = [1, 1]} : vector<4x512xf32> to vector<1x512xf32>
    %24 = vector.broadcast %23 : vector<1x512xf32> to vector<4x512xf32>
    %25 = arith.mulf %22, %24 : vector<4x512xf32>
    %26 = arith.addf %21, %25 : vector<4x512xf32>
    %c0_11 = arith.constant 0 : index
    %c0_12 = arith.constant 0 : index
    %27 = vector.load %arg6[%c0_11, %c0_12] : memref<4x1xf32, #tpu.memory_space<vmem>>, vector<4x1xf32>
    %28 = vector.broadcast %27 : vector<4x1xf32> to vector<4x512xf32>
    %29 = arith.addf %26, %28 : vector<4x512xf32>
    %30 = tpu.concatenate %29, %3 in 0 : vector<4x512xf32>, vector<4x512xf32> -> vector<8x512xf32>
    %c0_13 = arith.constant 0 : index
    %c0_14 = arith.constant 0 : index
    %31 = vector.load %arg7[%c0_13, %c0_14] : memref<4x72xf32, #tpu.memory_space<vmem>>, vector<4x72xf32>
    %c0_15 = arith.constant 0 : index
    %c0_16 = arith.constant 0 : index
    %32 = vector.load %arg9[%c0_15, %c0_16] : memref<4x1xf32, #tpu.memory_space<vmem>>, vector<4x1xf32>
    %c0_17 = arith.constant 0 : index
    %c0_18 = arith.constant 0 : index
    %33 = vector.load %arg10[%c0_17, %c0_18] : memref<4x1xf32, #tpu.memory_space<vmem>>, vector<4x1xf32>
    %c17_i32 = arith.constant 17 : i32
    %34 = tpu.dynamic_rotate %30 by %c17_i32 dim 1 : vector<8x512xf32>, i32 -> vector<8x512xf32>
    %35 = vector.extract_strided_slice %5 {offsets = [0, 0], sizes = [1, 512], strides = [1, 1]} : vector<9x512xf32> to vector<1x512xf32>
    %36 = vector.broadcast %35 : vector<1x512xf32> to vector<8x512xf32>
    %37 = arith.mulf %34, %36 : vector<8x512xf32>
    %c16_i32 = arith.constant 16 : i32
    %38 = tpu.dynamic_rotate %30 by %c16_i32 dim 1 : vector<8x512xf32>, i32 -> vector<8x512xf32>
    %39 = vector.extract_strided_slice %5 {offsets = [1, 0], sizes = [1, 512], strides = [1, 1]} : vector<9x512xf32> to vector<1x512xf32>
    %40 = vector.broadcast %39 : vector<1x512xf32> to vector<8x512xf32>
    %41 = arith.mulf %38, %40 : vector<8x512xf32>
    %c15_i32 = arith.constant 15 : i32
    %42 = tpu.dynamic_rotate %30 by %c15_i32 dim 1 : vector<8x512xf32>, i32 -> vector<8x512xf32>
    %43 = vector.extract_strided_slice %5 {offsets = [2, 0], sizes = [1, 512], strides = [1, 1]} : vector<9x512xf32> to vector<1x512xf32>
    %44 = vector.broadcast %43 : vector<1x512xf32> to vector<8x512xf32>
    %45 = arith.mulf %42, %44 : vector<8x512xf32>
    %c1_i32 = arith.constant 1 : i32
    %46 = tpu.dynamic_rotate %30 by %c1_i32 dim 1 : vector<8x512xf32>, i32 -> vector<8x512xf32>
    %47 = vector.extract_strided_slice %5 {offsets = [3, 0], sizes = [1, 512], strides = [1, 1]} : vector<9x512xf32> to vector<1x512xf32>
    %48 = vector.broadcast %47 : vector<1x512xf32> to vector<8x512xf32>
    %49 = arith.mulf %46, %48 : vector<8x512xf32>
    %c511_i32 = arith.constant 511 : i32
    %50 = tpu.dynamic_rotate %30 by %c511_i32 dim 1 : vector<8x512xf32>, i32 -> vector<8x512xf32>
    %51 = vector.extract_strided_slice %5 {offsets = [5, 0], sizes = [1, 512], strides = [1, 1]} : vector<9x512xf32> to vector<1x512xf32>
    %52 = vector.broadcast %51 : vector<1x512xf32> to vector<8x512xf32>
    %53 = arith.mulf %50, %52 : vector<8x512xf32>
    %c497_i32 = arith.constant 497 : i32
    %54 = tpu.dynamic_rotate %30 by %c497_i32 dim 1 : vector<8x512xf32>, i32 -> vector<8x512xf32>
    %55 = vector.extract_strided_slice %5 {offsets = [6, 0], sizes = [1, 512], strides = [1, 1]} : vector<9x512xf32> to vector<1x512xf32>
    %56 = vector.broadcast %55 : vector<1x512xf32> to vector<8x512xf32>
    %57 = arith.mulf %54, %56 : vector<8x512xf32>
    %c496_i32 = arith.constant 496 : i32
    %58 = tpu.dynamic_rotate %30 by %c496_i32 dim 1 : vector<8x512xf32>, i32 -> vector<8x512xf32>
    %59 = vector.extract_strided_slice %5 {offsets = [7, 0], sizes = [1, 512], strides = [1, 1]} : vector<9x512xf32> to vector<1x512xf32>
    %60 = vector.broadcast %59 : vector<1x512xf32> to vector<8x512xf32>
    %61 = arith.mulf %58, %60 : vector<8x512xf32>
    %c495_i32 = arith.constant 495 : i32
    %62 = tpu.dynamic_rotate %30 by %c495_i32 dim 1 : vector<8x512xf32>, i32 -> vector<8x512xf32>
    %63 = vector.extract_strided_slice %5 {offsets = [8, 0], sizes = [1, 512], strides = [1, 1]} : vector<9x512xf32> to vector<1x512xf32>
    %64 = vector.broadcast %63 : vector<1x512xf32> to vector<8x512xf32>
    %65 = arith.mulf %62, %64 : vector<8x512xf32>
    %66 = tpu.concatenate %37, %41, %45, %49, %30, %53, %57, %61, %65 in 0 : vector<8x512xf32>, vector<8x512xf32>, vector<8x512xf32>, vector<8x512xf32>, vector<8x512xf32>, vector<8x512xf32>, vector<8x512xf32>, vector<8x512xf32>, vector<8x512xf32> -> vector<72x512xf32>
    %cst_19 = arith.constant dense<0.000000e+00> : vector<4x512xf32>
    %67 = tpu.matmul %31, %66, %cst_19 {dimension_numbers = #tpu.dot_dimension_numbers<[1], [0], [0], [1], [0, 0, 1, 1], [], []>} : vector<4x72xf32>, vector<72x512xf32>, vector<4x512xf32> -> vector<4x512xf32>
    %68 = vector.broadcast %32 : vector<4x1xf32> to vector<4x512xf32>
    %69 = arith.mulf %67, %68 : vector<4x512xf32>
    %70 = vector.broadcast %33 : vector<4x1xf32> to vector<4x512xf32>
    %71 = arith.addf %69, %70 : vector<4x512xf32>
    %c0_20 = arith.constant 0 : index
    %c0_21 = arith.constant 0 : index
    %72 = vector.load %arg8[%c0_20, %c0_21] : memref<4x36xf32, #tpu.memory_space<vmem>>, vector<4x36xf32>
    %c0_22 = arith.constant 0 : index
    %c0_23 = arith.constant 0 : index
    %73 = vector.load %arg11[%c0_22, %c0_23] : memref<4x1xf32, #tpu.memory_space<vmem>>, vector<4x1xf32>
    %c0_24 = arith.constant 0 : index
    %c0_25 = arith.constant 0 : index
    %74 = vector.load %arg12[%c0_24, %c0_25] : memref<4x1xf32, #tpu.memory_space<vmem>>, vector<4x1xf32>
    %c17_i32_26 = arith.constant 17 : i32
    %75 = tpu.dynamic_rotate %71 by %c17_i32_26 dim 1 : vector<4x512xf32>, i32 -> vector<4x512xf32>
    %76 = vector.extract_strided_slice %5 {offsets = [0, 0], sizes = [1, 512], strides = [1, 1]} : vector<9x512xf32> to vector<1x512xf32>
    %77 = vector.broadcast %76 : vector<1x512xf32> to vector<4x512xf32>
    %78 = arith.mulf %75, %77 : vector<4x512xf32>
    %c16_i32_27 = arith.constant 16 : i32
    %79 = tpu.dynamic_rotate %71 by %c16_i32_27 dim 1 : vector<4x512xf32>, i32 -> vector<4x512xf32>
    %80 = vector.extract_strided_slice %5 {offsets = [1, 0], sizes = [1, 512], strides = [1, 1]} : vector<9x512xf32> to vector<1x512xf32>
    %81 = vector.broadcast %80 : vector<1x512xf32> to vector<4x512xf32>
    %82 = arith.mulf %79, %81 : vector<4x512xf32>
    %c15_i32_28 = arith.constant 15 : i32
    %83 = tpu.dynamic_rotate %71 by %c15_i32_28 dim 1 : vector<4x512xf32>, i32 -> vector<4x512xf32>
    %84 = vector.extract_strided_slice %5 {offsets = [2, 0], sizes = [1, 512], strides = [1, 1]} : vector<9x512xf32> to vector<1x512xf32>
    %85 = vector.broadcast %84 : vector<1x512xf32> to vector<4x512xf32>
    %86 = arith.mulf %83, %85 : vector<4x512xf32>
    %c1_i32_29 = arith.constant 1 : i32
    %87 = tpu.dynamic_rotate %71 by %c1_i32_29 dim 1 : vector<4x512xf32>, i32 -> vector<4x512xf32>
    %88 = vector.extract_strided_slice %5 {offsets = [3, 0], sizes = [1, 512], strides = [1, 1]} : vector<9x512xf32> to vector<1x512xf32>
    %89 = vector.broadcast %88 : vector<1x512xf32> to vector<4x512xf32>
    %90 = arith.mulf %87, %89 : vector<4x512xf32>
    %c511_i32_30 = arith.constant 511 : i32
    %91 = tpu.dynamic_rotate %71 by %c511_i32_30 dim 1 : vector<4x512xf32>, i32 -> vector<4x512xf32>
    %92 = vector.extract_strided_slice %5 {offsets = [5, 0], sizes = [1, 512], strides = [1, 1]} : vector<9x512xf32> to vector<1x512xf32>
    %93 = vector.broadcast %92 : vector<1x512xf32> to vector<4x512xf32>
    %94 = arith.mulf %91, %93 : vector<4x512xf32>
    %c497_i32_31 = arith.constant 497 : i32
    %95 = tpu.dynamic_rotate %71 by %c497_i32_31 dim 1 : vector<4x512xf32>, i32 -> vector<4x512xf32>
    %96 = vector.extract_strided_slice %5 {offsets = [6, 0], sizes = [1, 512], strides = [1, 1]} : vector<9x512xf32> to vector<1x512xf32>
    %97 = vector.broadcast %96 : vector<1x512xf32> to vector<4x512xf32>
    %98 = arith.mulf %95, %97 : vector<4x512xf32>
    %c496_i32_32 = arith.constant 496 : i32
    %99 = tpu.dynamic_rotate %71 by %c496_i32_32 dim 1 : vector<4x512xf32>, i32 -> vector<4x512xf32>
    %100 = vector.extract_strided_slice %5 {offsets = [7, 0], sizes = [1, 512], strides = [1, 1]} : vector<9x512xf32> to vector<1x512xf32>
    %101 = vector.broadcast %100 : vector<1x512xf32> to vector<4x512xf32>
    %102 = arith.mulf %99, %101 : vector<4x512xf32>
    %c495_i32_33 = arith.constant 495 : i32
    %103 = tpu.dynamic_rotate %71 by %c495_i32_33 dim 1 : vector<4x512xf32>, i32 -> vector<4x512xf32>
    %104 = vector.extract_strided_slice %5 {offsets = [8, 0], sizes = [1, 512], strides = [1, 1]} : vector<9x512xf32> to vector<1x512xf32>
    %105 = vector.broadcast %104 : vector<1x512xf32> to vector<4x512xf32>
    %106 = arith.mulf %103, %105 : vector<4x512xf32>
    %107 = tpu.concatenate %78, %82, %86, %90, %71, %94, %98, %102, %106 in 0 : vector<4x512xf32>, vector<4x512xf32>, vector<4x512xf32>, vector<4x512xf32>, vector<4x512xf32>, vector<4x512xf32>, vector<4x512xf32>, vector<4x512xf32>, vector<4x512xf32> -> vector<36x512xf32>
    %cst_34 = arith.constant dense<0.000000e+00> : vector<4x512xf32>
    %108 = tpu.matmul %72, %107, %cst_34 {dimension_numbers = #tpu.dot_dimension_numbers<[1], [0], [0], [1], [0, 0, 1, 1], [], []>} : vector<4x36xf32>, vector<36x512xf32>, vector<4x512xf32> -> vector<4x512xf32>
    %109 = vector.broadcast %73 : vector<4x1xf32> to vector<4x512xf32>
    %110 = arith.mulf %108, %109 : vector<4x512xf32>
    %111 = vector.broadcast %74 : vector<4x1xf32> to vector<4x512xf32>
    %112 = arith.addf %110, %111 : vector<4x512xf32>
    %c0_35 = arith.constant 0 : index
    %c0_36 = arith.constant 0 : index
    %c0_37 = arith.constant 0 : index
    %113 = vector.load %arg13[%c0_35, %c0_36, %c0_37] : memref<1x4x512xf32, #tpu.memory_space<vmem>>, vector<1x4x512xf32>
    %114 = vector.shape_cast %113 : vector<1x4x512xf32> to vector<4x512xf32>
    %115 = vector.shape_cast %112 : vector<4x512xf32> to vector<1x4x512xf32>
    tpu.vector_store %arg13[%c0_35, %c0_36, %c0_37], %115 {strides = array<i32>} : memref<1x4x512xf32, #tpu.memory_space<vmem>>, vector<1x4x512xf32>,
    return
  }
  func.func @transform_0(%arg0: i32) -> (i32, i32, i32) {
    %c0_i32 = arith.constant 0 : i32
    %c0_i32_0 = arith.constant 0 : i32
    %c0_i32_1 = arith.constant 0 : i32
    return %arg0, %c0_i32, %c0_i32_0 : i32, i32, i32
  }
  func.func @transform_1(%arg0: i32) -> (i32, i32, i32) {
    %c0_i32 = arith.constant 0 : i32
    %c0_i32_0 = arith.constant 0 : i32
    %c0_i32_1 = arith.constant 0 : i32
    return %arg0, %c0_i32, %c0_i32_0 : i32, i32, i32
  }
  func.func @transform_2(%arg0: i32) -> (i32, i32) {
    %c0_i32 = arith.constant 0 : i32
    %c0_i32_0 = arith.constant 0 : i32
    %c0_i32_1 = arith.constant 0 : i32
    return %c0_i32, %c0_i32_0 : i32, i32
  }
  func.func @transform_3(%arg0: i32) -> (i32, i32) {
    %c0_i32 = arith.constant 0 : i32
    %c0_i32_0 = arith.constant 0 : i32
    %c0_i32_1 = arith.constant 0 : i32
    return %c0_i32, %c0_i32_0 : i32, i32
  }
  func.func @transform_4(%arg0: i32) -> (i32, i32) {
    %c0_i32 = arith.constant 0 : i32
    %c0_i32_0 = arith.constant 0 : i32
    %c0_i32_1 = arith.constant 0 : i32
    return %c0_i32, %c0_i32_0 : i32, i32
  }
  func.func @transform_5(%arg0: i32) -> (i32, i32) {
    %c0_i32 = arith.constant 0 : i32
    %c0_i32_0 = arith.constant 0 : i32
    %c0_i32_1 = arith.constant 0 : i32
    return %c0_i32, %c0_i32_0 : i32, i32
  }
  func.func @transform_6(%arg0: i32) -> (i32, i32) {
    %c0_i32 = arith.constant 0 : i32
    %c0_i32_0 = arith.constant 0 : i32
    %c0_i32_1 = arith.constant 0 : i32
    return %c0_i32, %c0_i32_0 : i32, i32
  }
  func.func @transform_7(%arg0: i32) -> (i32, i32) {
    %c0_i32 = arith.constant 0 : i32
    %c0_i32_0 = arith.constant 0 : i32
    %c0_i32_1 = arith.constant 0 : i32
    return %c0_i32, %c0_i32_0 : i32, i32
  }
  func.func @transform_8(%arg0: i32) -> (i32, i32) {
    %c0_i32 = arith.constant 0 : i32
    %c0_i32_0 = arith.constant 0 : i32
    %c0_i32_1 = arith.constant 0 : i32
    return %c0_i32, %c0_i32_0 : i32, i32
  }
  func.func @transform_9(%arg0: i32) -> (i32, i32) {
    %c0_i32 = arith.constant 0 : i32
    %c0_i32_0 = arith.constant 0 : i32
    %c0_i32_1 = arith.constant 0 : i32
    return %c0_i32, %c0_i32_0 : i32, i32
  }
  func.func @transform_10(%arg0: i32) -> (i32, i32) {
    %c0_i32 = arith.constant 0 : i32
    %c0_i32_0 = arith.constant 0 : i32
    %c0_i32_1 = arith.constant 0 : i32
    return %c0_i32, %c0_i32_0 : i32, i32
  }
  func.func @transform_11(%arg0: i32) -> (i32, i32) {
    %c0_i32 = arith.constant 0 : i32
    %c0_i32_0 = arith.constant 0 : i32
    %c0_i32_1 = arith.constant 0 : i32
    return %c0_i32, %c0_i32_0 : i32, i32
  }
  func.func @transform_12(%arg0: i32) -> (i32, i32, i32) {
    %c0_i32 = arith.constant 0 : i32
    %c0_i32_0 = arith.constant 0 : i32
    %c0_i32_1 = arith.constant 0 : i32
    return %arg0, %c0_i32, %c0_i32_0 : i32, i32, i32
  }
}

</mosaic_0001>

<llo_original>
// kernel: tpu_custom_call.1
$region0: #{tpu_custom_call.1}
  #allocation0 [shape = 'u32[]', space=smem, size = 0x4, offset = 0x4, fixed_abs, tag = 'smem constant byte address 0x4 - core index']
  #allocation1 [shape = 'u32[72,128]{1,0:T(1,128)}', space=vmem, size = 0x9000, scoped, tag = 'internal scratch']
  %s0 = inlined_call_operand.hbm [shape: f32[1,8,512], index: 0, kind: input, shape index: {}]
  %s1 = inlined_call_operand.vmem [shape: f32[1,4,512], index: 1, kind: input, shape index: {}]
  %s2 = inlined_call_operand.hbm [shape: f32[4,512], index: 2, kind: input, shape index: {}]
  %s3 = inlined_call_operand.hbm [shape: f32[9,512], index: 3, kind: input, shape index: {}]
  %s4 = inlined_call_operand.vmem [shape: f32[16,8], index: 4, kind: input, shape index: {}]
  %s5 = inlined_call_operand.vmem [shape: f32[4,1], index: 5, kind: input, shape index: {}]
  %s6 = inlined_call_operand.vmem [shape: f32[4,72], index: 6, kind: input, shape index: {}]
  %s7 = inlined_call_operand.vmem [shape: f32[4,36], index: 7, kind: input, shape index: {}]
  %s8 = inlined_call_operand.vmem [shape: f32[4,1], index: 8, kind: input, shape index: {}]
  %s9 = inlined_call_operand.vmem [shape: f32[4,1], index: 9, kind: input, shape index: {}]
  %s10 = inlined_call_operand.vmem [shape: f32[4,1], index: 10, kind: input, shape index: {}]
  %s11 = inlined_call_operand.vmem [shape: f32[4,1], index: 11, kind: input, shape index: {}]
  %s12 = inlined_call_operand.hbm [shape: f32[1,4,512], index: 12, kind: output, shape index: {}]
  %s13 = sld [smem:[#allocation0]]
  $region70: #{tpu_custom_call.1} parent=0
    _
  %s15 = ssub.s32 1, %s13
  %s16 = scalar_select 0, %s15, %s13
  $region1: #{tpu_custom_call.1} parent=0
    #allocation2 [shape = 'u8[16384]{0}', space=vmem, size = 0x4000, scoped, tag = 'input window, operand 0, single buffered']
    #allocation3 [shape = 's32[1]{0}', space=sflag, size = 0x4, scoped, tag = 'scoped memory for tpu_custom_call.1']
    #allocation4 [shape = 's32[1]{0}', space=sflag, size = 0x4, scoped, tag = 'scoped memory for tpu_custom_call.1']
    #allocation5 [shape = 'u8[8192]{0}', space=vmem, size = 0x2000, scoped, tag = 'input window, operand 2, single buffered']
    #allocation6 [shape = 's32[1]{0}', space=sflag, size = 0x4, scoped, tag = 'scoped memory for tpu_custom_call.1']
    #allocation7 [shape = 'u8[32768]{0}', space=vmem, size = 0x8000, scoped, tag = 'input window, operand 3, single buffered']
    #allocation8 [shape = 'u8[8192]{0}', space=vmem, size = 0x2000, scoped, tag = 'output window, operand 0, single buffered']
    %17 = vsyncpa [#allocation3], 0
    %18 = vsyncpa [#allocation6], 0
    %19 = vsyncpa [#allocation4], 0
    // Predicated region
    $region2: #{tpu_custom_call.1} parent=1 // pred_check
      _
    $region3: #{tpu_custom_call.1} parent=1 // pred_check_branch
      %21 = sbr.rel (0) target = $region5
    $region4: #{tpu_custom_call.1} parent=1 // pred_region
      %23 = vsyncadd [#allocation3], 0
      %s25 = sshll.u32 %s0, 4
      %s26 = int_to_ptr.hbm [resolvable:$true] %s25
      %s27 = sshll.u32 [#allocation2], 4
      %s28 = int_to_ptr.vmem [resolvable:$true] %s27
      %30 = dma.hbm_to_vmem [thread:$0]  %s26, 512, %s28, [#allocation3]
    $region5: #{tpu_custom_call.1} parent=1 // pred_fallthru
      _
    // Predicated region
    $region6: #{tpu_custom_call.1} parent=1 // pred_check
      _
    $region7: #{tpu_custom_call.1} parent=1 // pred_check_branch
      %32 = sbr.rel (0) target = $region9
    $region8: #{tpu_custom_call.1} parent=1 // pred_region
      _
    $region9: #{tpu_custom_call.1} parent=1 // pred_fallthru
      _
    // Predicated region
    $region10: #{tpu_custom_call.1} parent=1 // pred_check
      _
    $region11: #{tpu_custom_call.1} parent=1 // pred_check_branch
      %34 = sbr.rel (0) target = $region13
    $region12: #{tpu_custom_call.1} parent=1 // pred_region
      %36 = vsyncadd [#allocation6], 0
      %s38 = sshll.u32 %s2, 4
      %s39 = int_to_ptr.hbm [resolvable:$true] %s38
      %s40 = sshll.u32 [#allocation5], 4
      %s41 = int_to_ptr.vmem [resolvable:$true] %s40
      %43 = dma.hbm_to_vmem [thread:$0]  %s39, 256, %s41, [#allocation6]
    $region13: #{tpu_custom_call.1} parent=1 // pred_fallthru
      _
    // Predicated region
    $region14: #{tpu_custom_call.1} parent=1 // pred_check
      _
    $region15: #{tpu_custom_call.1} parent=1 // pred_check_branch
      %45 = sbr.rel (0) target = $region17
    $region16: #{tpu_custom_call.1} parent=1 // pred_region
      %47 = vsyncadd [#allocation6], 0
      %s48 = sshll.u32 %s3, 4
      %s49 = int_to_ptr.hbm [resolvable:$true] %s48
      %s50 = sshll.u32 [#allocation7], 4
      %s51 = int_to_ptr.vmem [resolvable:$true] %s50
      %56 = dma.hbm_to_vmem [thread:$0]  %s49, 1024, %s51, [#allocation6], 512, 512, 32
    $region17: #{tpu_custom_call.1} parent=1 // pred_fallthru
      _
    // Predicated region
    $region18: #{tpu_custom_call.1} parent=1 // pred_check
      _
    $region19: #{tpu_custom_call.1} parent=1 // pred_check_branch
      %58 = sbr.rel (0) target = $region21
    $region20: #{tpu_custom_call.1} parent=1 // pred_region
      _
    $region21: #{tpu_custom_call.1} parent=1 // pred_fallthru
      _
    // Predicated region
    $region22: #{tpu_custom_call.1} parent=1 // pred_check
      _
    $region23: #{tpu_custom_call.1} parent=1 // pred_check_branch
      %60 = sbr.rel (0) target = $region25
    $region24: #{tpu_custom_call.1} parent=1 // pred_region
      _
    $region25: #{tpu_custom_call.1} parent=1 // pred_fallthru
      _
    // Predicated region
    $region26: #{tpu_custom_call.1} parent=1 // pred_check
      _
    $region27: #{tpu_custom_call.1} parent=1 // pred_check_branch
      %62 = sbr.rel (0) target = $region29
    $region28: #{tpu_custom_call.1} parent=1 // pred_region
      _
    $region29: #{tpu_custom_call.1} parent=1 // pred_fallthru
      _
    // Predicated region
    $region30: #{tpu_custom_call.1} parent=1 // pred_check
      _
    $region31: #{tpu_custom_call.1} parent=1 // pred_check_branch
      %64 = sbr.rel (0) target = $region33
    $region32: #{tpu_custom_call.1} parent=1 // pred_region
      _
    $region33: #{tpu_custom_call.1} parent=1 // pred_fallthru
      _
    // Predicated region
    $region34: #{tpu_custom_call.1} parent=1 // pred_check
      _
    $region35: #{tpu_custom_call.1} parent=1 // pred_check_branch
      %66 = sbr.rel (0) target = $region37
    $region36: #{tpu_custom_call.1} parent=1 // pred_region
      _
    $region37: #{tpu_custom_call.1} parent=1 // pred_fallthru
      _
    // Predicated region
    $region38: #{tpu_custom_call.1} parent=1 // pred_check
      _
    $region39: #{tpu_custom_call.1} parent=1 // pred_check_branch
      %68 = sbr.rel (0) target = $region41
    $region40: #{tpu_custom_call.1} parent=1 // pred_region
      _
    $region41: #{tpu_custom_call.1} parent=1 // pred_fallthru
      _
    // Predicated region
    $region42: #{tpu_custom_call.1} parent=1 // pred_check
      _
    $region43: #{tpu_custom_call.1} parent=1 // pred_check_branch
      %70 = sbr.rel (0) target = $region45
    $region44: #{tpu_custom_call.1} parent=1 // pred_region
      _
    $region45: #{tpu_custom_call.1} parent=1 // pred_fallthru
      _
    // Predicated region
    $region46: #{tpu_custom_call.1} parent=1 // pred_check
      _
    $region47: #{tpu_custom_call.1} parent=1 // pred_check_branch
      %72 = sbr.rel (0) target = $region49
    $region48: #{tpu_custom_call.1} parent=1 // pred_region
      _
    $region49: #{tpu_custom_call.1} parent=1 // pred_fallthru
      _
    // Predicated region
    $region50: #{tpu_custom_call.1} parent=1 // pred_check
      _
    $region51: #{tpu_custom_call.1} parent=1 // pred_check_branch
      %74 = sbr.rel (0) target = $region53
    $region52: #{tpu_custom_call.1} parent=1 // pred_region
      %76 = dma.done [#allocation3], 512
    $region53: #{tpu_custom_call.1} parent=1 // pred_fallthru
      _
    // Predicated region
    $region54: #{tpu_custom_call.1} parent=1 // pred_check
      _
    $region55: #{tpu_custom_call.1} parent=1 // pred_check_branch
      %78 = sbr.rel (0) target = $region57
    $region56: #{tpu_custom_call.1} parent=1 // pred_region
      %80 = dma.done [#allocation6], 256
    $region57: #{tpu_custom_call.1} parent=1 // pred_fallthru
      _
    // Predicated region
    $region58: #{tpu_custom_call.1} parent=1 // pred_check
      _
    $region59: #{tpu_custom_call.1} parent=1 // pred_check_branch
      %82 = sbr.rel (0) target = $region61
    $region60: #{tpu_custom_call.1} parent=1 // pred_region
      %84 = dma.done [#allocation6], 1024
    $region61: #{tpu_custom_call.1} parent=1 // pred_fallthru
      _
    %v85 = vld [vmem:[#allocation2] sm:$0xff]
    %v86 = vld [vmem:[#allocation2 + $0x8] sm:$0xff]
    %v87 = vld [vmem:[#allocation2 + $0x10] sm:$0xff]
    %v88 = vld [vmem:[#allocation2 + $0x18] sm:$0xff]
    %v89 = vld [vmem:[%s1] sm:$0xff]
    %v90 = vld [vmem:[%s1 + $0x8] sm:$0xff]
    %v91 = vld [vmem:[#allocation5] sm:$0xff]
    %v92 = vld [vmem:[#allocation5 + $0x8] sm:$0xff]
    %v93 = vld [vmem:[#allocation7] sm:$0xff]
    %v94 = vld [vmem:[#allocation7 + $0x8] sm:$0xff]
    %v95 = vld [vmem:[#allocation7 + $0x10] sm:$0xff]
    %v96 = vld [vmem:[#allocation7 + $0x18] sm:$0xff]
    %v97 = vld [vmem:[#allocation7 + $0x20] sm:$0x1]
    %v98 = vld [vmem:[#allocation7 + $0x28] sm:$0x1]
    %v99 = vld [vmem:[#allocation7 + $0x30] sm:$0x1]
    %v100 = vld [vmem:[#allocation7 + $0x38] sm:$0x1]
    %v101 = vld [vmem:[%s4] sm:$0xff]
    %v102 = vld [vmem:[%s4 + $0x8] sm:$0xff]
    %vm103 = vcmask 64512
    %v105 = vsel %vm103, %v101, 0
    %v108 = vsel %vm103, %v102, 0
    %110 = vmatpush.msra.mxu0 0.0
    %111 = vmatpush.msra.mxu0 0.0
    %112 = vmatpush.msra.mxu0 0.0
    %113 = vmatpush.msra.mxu0 0.0
    %114 = vmatpush.msra.mxu0 0.0
    %115 = vmatpush.msra.mxu0 0.0
    %116 = vmatpush.msra.mxu0 0.0
    %117 = vmatpush.msra.mxu0 0.0
    %118 = vmatpush.msra.mxu0 0.0
    %119 = vmatpush.msra.mxu0 0.0
    %120 = vmatpush.msra.mxu0 0.0
    %121 = vmatpush.msra.mxu0 0.0
    %122 = vmatpush.msra.mxu0 0.0
    %123 = vmatpush.msra.mxu0 0.0
    %124 = vmatpush.msra.mxu0 0.0
    %125 = vmatpush.msra.mxu0 %v85
    %126 = vmatmul.f32.gmra.mxu0 %v105
    %v127 = vpop.f32.mrf.mxu0
    %v128 = vadd.f32 0.0, %v127
    %129 = vmatmul.f32.gmra.mxu0 %v108
    %v130 = vpop.f32.mrf.mxu0
    %v131 = vadd.f32 0.0, %v130
    %132 = vdwg.mxu0
    %133 = vmatpush.msra.mxu0 0.0
    %134 = vmatpush.msra.mxu0 0.0
    %135 = vmatpush.msra.mxu0 0.0
    %136 = vmatpush.msra.mxu0 0.0
    %137 = vmatpush.msra.mxu0 0.0
    %138 = vmatpush.msra.mxu0 0.0
    %139 = vmatpush.msra.mxu0 0.0
    %140 = vmatpush.msra.mxu0 0.0
    %141 = vmatpush.msra.mxu0 0.0
    %142 = vmatpush.msra.mxu0 0.0
    %143 = vmatpush.msra.mxu0 0.0
    %144 = vmatpush.msra.mxu0 0.0
    %145 = vmatpush.msra.mxu0 0.0
    %146 = vmatpush.msra.mxu0 0.0
    %147 = vmatpush.msra.mxu0 0.0
    %148 = vmatpush.msra.mxu0 %v86
    %149 = vmatmul.f32.gmra.mxu0 %v105
    %v150 = vpop.f32.mrf.mxu0
    %v151 = vadd.f32 0.0, %v150
    %152 = vmatmul.f32.gmra.mxu0 %v108
    %v153 = vpop.f32.mrf.mxu0
    %v154 = vadd.f32 0.0, %v153
    %155 = vdwg.mxu0
    %156 = vmatpush.msra.mxu0 0.0
    %157 = vmatpush.msra.mxu0 0.0
    %158 = vmatpush.msra.mxu0 0.0
    %159 = vmatpush.msra.mxu0 0.0
    %160 = vmatpush.msra.mxu0 0.0
    %161 = vmatpush.msra.mxu0 0.0
    %162 = vmatpush.msra.mxu0 0.0
    %163 = vmatpush.msra.mxu0 0.0
    %164 = vmatpush.msra.mxu0 0.0
    %165 = vmatpush.msra.mxu0 0.0
    %166 = vmatpush.msra.mxu0 0.0
    %167 = vmatpush.msra.mxu0 0.0
    %168 = vmatpush.msra.mxu0 0.0
    %169 = vmatpush.msra.mxu0 0.0
    %170 = vmatpush.msra.mxu0 0.0
    %171 = vmatpush.msra.mxu0 %v87
    %172 = vmatmul.f32.gmra.mxu0 %v105
    %v173 = vpop.f32.mrf.mxu0
    %v174 = vadd.f32 0.0, %v173
    %175 = vmatmul.f32.gmra.mxu0 %v108
    %v176 = vpop.f32.mrf.mxu0
    %v177 = vadd.f32 0.0, %v176
    %178 = vdwg.mxu0
    %179 = vmatpush.msra.mxu0 0.0
    %180 = vmatpush.msra.mxu0 0.0
    %181 = vmatpush.msra.mxu0 0.0
    %182 = vmatpush.msra.mxu0 0.0
    %183 = vmatpush.msra.mxu0 0.0
    %184 = vmatpush.msra.mxu0 0.0
    %185 = vmatpush.msra.mxu0 0.0
    %186 = vmatpush.msra.mxu0 0.0
    %187 = vmatpush.msra.mxu0 0.0
    %188 = vmatpush.msra.mxu0 0.0
    %189 = vmatpush.msra.mxu0 0.0
    %190 = vmatpush.msra.mxu0 0.0
    %191 = vmatpush.msra.mxu0 0.0
    %192 = vmatpush.msra.mxu0 0.0
    %193 = vmatpush.msra.mxu0 0.0
    %194 = vmatpush.msra.mxu0 %v88
    %195 = vmatmul.f32.gmra.mxu0 %v105
    %v196 = vpop.f32.mrf.mxu0
    %v197 = vadd.f32 0.0, %v196
    %198 = vmatmul.f32.gmra.mxu0 %v108
    %v199 = vpop.f32.mrf.mxu0
    %v200 = vadd.f32 0.0, %v199
    %201 = vdwg.mxu0
    %v204 = vperm.slane %v91, 0
    %v205 = vperm.slane %v91, 4
    %v206 = vperm.slane %v92, 0
    %v207 = vperm.slane %v92, 4
    %v212 = vperm.slane %v204, 0
    %v213 = vperm.slane %v205, 0
    %v214 = vperm.slane %v206, 0
    %v215 = vperm.slane %v207, 0
    %v216 = vmul.f32 %v128, %v212
    %v217 = vmul.f32 %v151, %v213
    %v218 = vmul.f32 %v174, %v214
    %v219 = vmul.f32 %v197, %v215
    %v220 = vperm.slane %v91, 1
    %v221 = vperm.slane %v91, 5
    %v222 = vperm.slane %v92, 1
    %v223 = vperm.slane %v92, 5
    %v228 = vperm.slane %v220, 1
    %v229 = vperm.slane %v221, 1
    %v230 = vperm.slane %v222, 1
    %v231 = vperm.slane %v223, 1
    %v232 = vmul.f32 %v128, %v228
    %v233 = vmul.f32 %v151, %v229
    %v234 = vmul.f32 %v174, %v230
    %v235 = vmul.f32 %v197, %v231
    %v240 = vrot.slane %v232, 4
    %v241 = vrot.slane %v233, 4
    %v242 = vrot.slane %v234, 4
    %v243 = vrot.slane %v235, 4
    %v248 = vadd.f32 %v216, %v240
    %v249 = vadd.f32 %v217, %v241
    %v250 = vadd.f32 %v218, %v242
    %v251 = vadd.f32 %v219, %v243
    %v252 = vperm.slane %v91, 2
    %v253 = vperm.slane %v91, 6
    %v254 = vperm.slane %v92, 2
    %v255 = vperm.slane %v92, 6
    %v260 = vperm.slane %v252, 2
    %v261 = vperm.slane %v253, 2
    %v262 = vperm.slane %v254, 2
    %v263 = vperm.slane %v255, 2
    %v264 = vmul.f32 %v131, %v260
    %v265 = vmul.f32 %v154, %v261
    %v266 = vmul.f32 %v177, %v262
    %v267 = vmul.f32 %v200, %v263
    %v268 = vadd.f32 %v248, %v264
    %v269 = vadd.f32 %v249, %v265
    %v270 = vadd.f32 %v250, %v266
    %v271 = vadd.f32 %v251, %v267
    %v272 = vperm.slane %v91, 3
    %v273 = vperm.slane %v91, 7
    %v274 = vperm.slane %v92, 3
    %v275 = vperm.slane %v92, 7
    %v280 = vperm.slane %v272, 3
    %v281 = vperm.slane %v273, 3
    %v282 = vperm.slane %v274, 3
    %v283 = vperm.slane %v275, 3
    %v284 = vmul.f32 %v131, %v280
    %v285 = vmul.f32 %v154, %v281
    %v286 = vmul.f32 %v177, %v282
    %v287 = vmul.f32 %v200, %v283
    %v292 = vrot.slane %v284, 4
    %v293 = vrot.slane %v285, 4
    %v294 = vrot.slane %v286, 4
    %v295 = vrot.slane %v287, 4
    %v300 = vadd.f32 %v268, %v292
    %v301 = vadd.f32 %v269, %v293
    %v302 = vadd.f32 %v270, %v294
    %v303 = vadd.f32 %v271, %v295
    %v304 = vld [vmem:[%s5] sm:$0xf]
    %306 = vset.pattern.permute.xlu0 0
    %307 = vperm.xlu0 %306, %v304
    %v308 = vpop.permute.xlu0 %307
    %v310 = vadd.f32 %v300, %v308
    %v311 = vadd.f32 %v301, %v308
    %v312 = vadd.f32 %v302, %v308
    %v313 = vadd.f32 %v303, %v308
    %s316 = scalar_lea.vmem [#allocation1], 1
    %317 = vst [vmem:[%s316] ss:$2 sm:$0xff] %v89
    %s318 = scalar_lea.vmem [#allocation1], 17
    %319 = vst [vmem:[%s318] ss:$2 sm:$0xff] %v90
    %v320 = vld.sshfl [vmem:[#allocation1] sm:$0xff pattern:$0x75316420]
    %v321 = vld.sshfl [vmem:[#allocation1 + $0x8] sm:$0xff pattern:$0x75316420]
    %v322 = vld.sshfl [vmem:[#allocation1 + $0x10] sm:$0xff pattern:$0x75316420]
    %v323 = vld.sshfl [vmem:[#allocation1 + $0x18] sm:$0xff pattern:$0x75316420]
    %vm328 = vcmask 1043456
    %v329 = vsel %vm328, %v310, %v320
    %v330 = vsel %vm328, %v311, %v321
    %v331 = vsel %vm328, %v312, %v322
    %v332 = vsel %vm328, %v313, %v323
    %v333 = vld [vmem:[%s6] sm:$0xf]
    %v334 = vld [vmem:[%s8] sm:$0xf]
    %v335 = vld [vmem:[%s9] sm:$0xf]
    %336 = vrot.lane.b32.xlu0 %v329, 17
    %v337 = vpop.permute.xlu0 %336
    %338 = vrot.lane.b32.xlu0 %v330, 17
    %v339 = vpop.permute.xlu0 %338
    %340 = vrot.lane.b32.xlu0 %v331, 17
    %v341 = vpop.permute.xlu0 %340
    %342 = vrot.lane.b32.xlu0 %v332, 17
    %v343 = vpop.permute.xlu0 %342
    %v344 = vlaneseq
    %v345 = vand.u32 %v344, 127
    %vm346 = vcmp.lt.s32.totalorder %v345, 17
    %v347 = vsel %vm346, %v341, %v343
    %v348 = vsel %vm346, %v339, %v341
    %v349 = vsel %vm346, %v337, %v339
    %v350 = vsel %vm346, %v343, %v337
    %v351 = vperm.slane %v93, 0
    %v352 = vperm.slane %v94, 0
    %v353 = vperm.slane %v95, 0
    %v354 = vperm.slane %v96, 0
    %v355 = vmul.f32 %v350, %v351
    %v356 = vmul.f32 %v349, %v352
    %v357 = vmul.f32 %v348, %v353
    %v358 = vmul.f32 %v347, %v354
    %359 = vrot.lane.b32.xlu0 %v329, 16
    %v360 = vpop.permute.xlu0 %359
    %361 = vrot.lane.b32.xlu0 %v330, 16
    %v362 = vpop.permute.xlu0 %361
    %363 = vrot.lane.b32.xlu0 %v331, 16
    %v364 = vpop.permute.xlu0 %363
    %365 = vrot.lane.b32.xlu0 %v332, 16
    %v366 = vpop.permute.xlu0 %365
    %vm367 = vcmp.lt.s32.totalorder %v345, 16
    %v368 = vsel %vm367, %v364, %v366
    %v369 = vsel %vm367, %v362, %v364
    %v370 = vsel %vm367, %v360, %v362
    %v371 = vsel %vm367, %v366, %v360
    %v372 = vperm.slane %v93, 1
    %v373 = vperm.slane %v94, 1
    %v374 = vperm.slane %v95, 1
    %v375 = vperm.slane %v96, 1
    %v376 = vmul.f32 %v371, %v372
    %v377 = vmul.f32 %v370, %v373
    %v378 = vmul.f32 %v369, %v374
    %v379 = vmul.f32 %v368, %v375
    %380 = vrot.lane.b32.xlu0 %v329, 15
    %v381 = vpop.permute.xlu0 %380
    %382 = vrot.lane.b32.xlu0 %v330, 15
    %v383 = vpop.permute.xlu0 %382
    %384 = vrot.lane.b32.xlu0 %v331, 15
    %v385 = vpop.permute.xlu0 %384
    %386 = vrot.lane.b32.xlu0 %v332, 15
    %v387 = vpop.permute.xlu0 %386
    %vm388 = vcmp.lt.s32.totalorder %v345, 15
    %v389 = vsel %vm388, %v385, %v387
    %v390 = vsel %vm388, %v383, %v385
    %v391 = vsel %vm388, %v381, %v383
    %v392 = vsel %vm388, %v387, %v381
    %v393 = vperm.slane %v93, 2
    %v394 = vperm.slane %v94, 2
    %v395 = vperm.slane %v95, 2
    %v396 = vperm.slane %v96, 2
    %v397 = vmul.f32 %v392, %v393
    %v398 = vmul.f32 %v391, %v394
    %v399 = vmul.f32 %v390, %v395
    %v400 = vmul.f32 %v389, %v396
    %401 = vrot.lane.b32.xlu0 %v329, 1
    %v402 = vpop.permute.xlu0 %401
    %403 = vrot.lane.b32.xlu0 %v330, 1
    %v404 = vpop.permute.xlu0 %403
    %405 = vrot.lane.b32.xlu0 %v331, 1
    %v406 = vpop.permute.xlu0 %405
    %407 = vrot.lane.b32.xlu0 %v332, 1
    %v408 = vpop.permute.xlu0 %407
    %vm409 = vcmp.lt.s32.totalorder %v345, 1
    %v410 = vsel %vm409, %v406, %v408
    %v411 = vsel %vm409, %v404, %v406
    %v412 = vsel %vm409, %v402, %v404
    %v413 = vsel %vm409, %v408, %v402
    %v414 = vperm.slane %v93, 3
    %v415 = vperm.slane %v94, 3
    %v416 = vperm.slane %v95, 3
    %v417 = vperm.slane %v96, 3
    %v418 = vmul.f32 %v413, %v414
    %v419 = vmul.f32 %v412, %v415
    %v420 = vmul.f32 %v411, %v416
    %v421 = vmul.f32 %v410, %v417
    %422 = vrot.lane.b32.xlu0 %v329, 127
    %v423 = vpop.permute.xlu0 %422
    %424 = vrot.lane.b32.xlu0 %v330, 127
    %v425 = vpop.permute.xlu0 %424
    %426 = vrot.lane.b32.xlu0 %v331, 127
    %v427 = vpop.permute.xlu0 %426
    %428 = vrot.lane.b32.xlu0 %v332, 127
    %v429 = vpop.permute.xlu0 %428
    %vm430 = vcmp.lt.s32.totalorder %v345, 127
    %v431 = vsel %vm430, %v427, %v429
    %v432 = vsel %vm430, %v425, %v427
    %v433 = vsel %vm430, %v423, %v425
    %v434 = vsel %vm430, %v429, %v423
    %v435 = vperm.slane %v93, 5
    %v436 = vperm.slane %v94, 5
    %v437 = vperm.slane %v95, 5
    %v438 = vperm.slane %v96, 5
    %v439 = vmul.f32 %v433, %v435
    %v440 = vmul.f32 %v432, %v436
    %v441 = vmul.f32 %v431, %v437
    %v442 = vmul.f32 %v434, %v438
    %443 = vrot.lane.b32.xlu0 %v329, 113
    %v444 = vpop.permute.xlu0 %443
    %445 = vrot.lane.b32.xlu0 %v330, 113
    %v446 = vpop.permute.xlu0 %445
    %447 = vrot.lane.b32.xlu0 %v331, 113
    %v448 = vpop.permute.xlu0 %447
    %449 = vrot.lane.b32.xlu0 %v332, 113
    %v450 = vpop.permute.xlu0 %449
    %vm451 = vcmp.lt.s32.totalorder %v345, 113
    %v452 = vsel %vm451, %v448, %v450
    %v453 = vsel %vm451, %v446, %v448
    %v454 = vsel %vm451, %v444, %v446
    %v455 = vsel %vm451, %v450, %v444
    %v456 = vperm.slane %v93, 6
    %v457 = vperm.slane %v94, 6
    %v458 = vperm.slane %v95, 6
    %v459 = vperm.slane %v96, 6
    %v460 = vmul.f32 %v454, %v456
    %v461 = vmul.f32 %v453, %v457
    %v462 = vmul.f32 %v452, %v458
    %v463 = vmul.f32 %v455, %v459
    %464 = vrot.lane.b32.xlu0 %v329, 112
    %v465 = vpop.permute.xlu0 %464
    %466 = vrot.lane.b32.xlu0 %v330, 112
    %v467 = vpop.permute.xlu0 %466
    %468 = vrot.lane.b32.xlu0 %v331, 112
    %v469 = vpop.permute.xlu0 %468
    %470 = vrot.lane.b32.xlu0 %v332, 112
    %v471 = vpop.permute.xlu0 %470
    %vm472 = vcmp.lt.s32.totalorder %v345, 112
    %v473 = vsel %vm472, %v469, %v471
    %v474 = vsel %vm472, %v467, %v469
    %v475 = vsel %vm472, %v465, %v467
    %v476 = vsel %vm472, %v471, %v465
    %v477 = vperm.slane %v93, 7
    %v478 = vperm.slane %v94, 7
    %v479 = vperm.slane %v95, 7
    %v480 = vperm.slane %v96, 7
    %v481 = vmul.f32 %v475, %v477
    %v482 = vmul.f32 %v474, %v478
    %v483 = vmul.f32 %v473, %v479
    %v484 = vmul.f32 %v476, %v480
    %485 = vrot.lane.b32.xlu0 %v329, 111
    %v486 = vpop.permute.xlu0 %485
    %487 = vrot.lane.b32.xlu0 %v330, 111
    %v488 = vpop.permute.xlu0 %487
    %489 = vrot.lane.b32.xlu0 %v331, 111
    %v490 = vpop.permute.xlu0 %489
    %491 = vrot.lane.b32.xlu0 %v332, 111
    %v492 = vpop.permute.xlu0 %491
    %vm493 = vcmp.lt.s32.totalorder %v345, 111
    %v494 = vsel %vm493, %v490, %v492
    %v495 = vsel %vm493, %v488, %v490
    %v496 = vsel %vm493, %v486, %v488
    %v497 = vsel %vm493, %v492, %v486
    %v498 = vperm.slane %v97, 0
    %v499 = vperm.slane %v98, 0
    %v500 = vperm.slane %v99, 0
    %v501 = vperm.slane %v100, 0
    %v502 = vmul.f32 %v496, %v498
    %v503 = vmul.f32 %v495, %v499
    %v504 = vmul.f32 %v494, %v500
    %v505 = vmul.f32 %v497, %v501
    %vm506 = vcmask 588800
    %v508 = vsel %vm506, %v333, 0
    %510 = vmatpush.msra.mxu0 0.0
    %511 = vmatpush.msra.mxu0 0.0
    %512 = vmatpush.msra.mxu0 0.0
    %513 = vmatpush.msra.mxu0 0.0
    %514 = vmatpush.msra.mxu0 0.0
    %515 = vmatpush.msra.mxu0 0.0
    %516 = vmatpush.msra.mxu0 0.0
    %517 = vmatpush.msra.mxu0 %v502
    %518 = vmatpush.msra.mxu0 %v481
    %519 = vmatpush.msra.mxu0 %v460
    %520 = vmatpush.msra.mxu0 %v439
    %521 = vmatpush.msra.mxu0 %v329
    %522 = vmatpush.msra.mxu0 %v418
    %523 = vmatpush.msra.mxu0 %v397
    %524 = vmatpush.msra.mxu0 %v376
    %525 = vmatpush.msra.mxu0 %v355
    %526 = vmatmul.f32.gmra.mxu0 %v508
    %v527 = vpop.f32.mrf.mxu0
    %v528 = vadd.f32 0.0, %v527
    %529 = vdwg.mxu0
    %530 = vmatpush.msra.mxu0 0.0
    %531 = vmatpush.msra.mxu0 0.0
    %532 = vmatpush.msra.mxu0 0.0
    %533 = vmatpush.msra.mxu0 0.0
    %534 = vmatpush.msra.mxu0 0.0
    %535 = vmatpush.msra.mxu0 0.0
    %536 = vmatpush.msra.mxu0 0.0
    %537 = vmatpush.msra.mxu0 %v503
    %538 = vmatpush.msra.mxu0 %v482
    %539 = vmatpush.msra.mxu0 %v461
    %540 = vmatpush.msra.mxu0 %v440
    %541 = vmatpush.msra.mxu0 %v330
    %542 = vmatpush.msra.mxu0 %v419
    %543 = vmatpush.msra.mxu0 %v398
    %544 = vmatpush.msra.mxu0 %v377
    %545 = vmatpush.msra.mxu0 %v356
    %546 = vmatmul.f32.gmra.mxu0 %v508
    %v547 = vpop.f32.mrf.mxu0
    %v548 = vadd.f32 0.0, %v547
    %549 = vdwg.mxu0
    %550 = vmatpush.msra.mxu0 0.0
    %551 = vmatpush.msra.mxu0 0.0
    %552 = vmatpush.msra.mxu0 0.0
    %553 = vmatpush.msra.mxu0 0.0
    %554 = vmatpush.msra.mxu0 0.0
    %555 = vmatpush.msra.mxu0 0.0
    %556 = vmatpush.msra.mxu0 0.0
    %557 = vmatpush.msra.mxu0 %v504
    %558 = vmatpush.msra.mxu0 %v483
    %559 = vmatpush.msra.mxu0 %v462
    %560 = vmatpush.msra.mxu0 %v441
    %561 = vmatpush.msra.mxu0 %v331
    %562 = vmatpush.msra.mxu0 %v420
    %563 = vmatpush.msra.mxu0 %v399
    %564 = vmatpush.msra.mxu0 %v378
    %565 = vmatpush.msra.mxu0 %v357
    %566 = vmatmul.f32.gmra.mxu0 %v508
    %v567 = vpop.f32.mrf.mxu0
    %v568 = vadd.f32 0.0, %v567
    %569 = vdwg.mxu0
    %570 = vmatpush.msra.mxu0 0.0
    %571 = vmatpush.msra.mxu0 0.0
    %572 = vmatpush.msra.mxu0 0.0
    %573 = vmatpush.msra.mxu0 0.0
    %574 = vmatpush.msra.mxu0 0.0
    %575 = vmatpush.msra.mxu0 0.0
    %576 = vmatpush.msra.mxu0 0.0
    %577 = vmatpush.msra.mxu0 %v505
    %578 = vmatpush.msra.mxu0 %v484
    %579 = vmatpush.msra.mxu0 %v463
    %580 = vmatpush.msra.mxu0 %v442
    %581 = vmatpush.msra.mxu0 %v332
    %582 = vmatpush.msra.mxu0 %v421
    %583 = vmatpush.msra.mxu0 %v400
    %584 = vmatpush.msra.mxu0 %v379
    %585 = vmatpush.msra.mxu0 %v358
    %586 = vmatmul.f32.gmra.mxu0 %v508
    %v587 = vpop.f32.mrf.mxu0
    %v588 = vadd.f32 0.0, %v587
    %589 = vdwg.mxu0
    %591 = vset.pattern.permute.xlu0 0
    %592 = vperm.xlu0 %591, %v334
    %v593 = vpop.permute.xlu0 %592
    %v595 = vmul.f32 %v528, %v593
    %v596 = vmul.f32 %v548, %v593
    %v597 = vmul.f32 %v568, %v593
    %v598 = vmul.f32 %v588, %v593
    %600 = vset.pattern.permute.xlu0 0
    %601 = vperm.xlu0 %600, %v335
    %v602 = vpop.permute.xlu0 %601
    %v604 = vadd.f32 %v595, %v602
    %v605 = vadd.f32 %v596, %v602
    %v606 = vadd.f32 %v597, %v602
    %v607 = vadd.f32 %v598, %v602
    %v608 = vld [vmem:[%s7] sm:$0xf]
    %v609 = vld [vmem:[%s10] sm:$0xf]
    %v610 = vld [vmem:[%s11] sm:$0xf]
    %611 = vrot.lane.b32.xlu0 %v604, 17
    %v612 = vpop.permute.xlu0 %611
    %613 = vrot.lane.b32.xlu0 %v605, 17
    %v614 = vpop.permute.xlu0 %613
    %615 = vrot.lane.b32.xlu0 %v606, 17
    %v616 = vpop.permute.xlu0 %615
    %617 = vrot.lane.b32.xlu0 %v607, 17
    %v618 = vpop.permute.xlu0 %617
    %v619 = vsel %vm346, %v616, %v618
    %v620 = vsel %vm346, %v614, %v616
    %v621 = vsel %vm346, %v612, %v614
    %v622 = vsel %vm346, %v618, %v612
    %v623 = vmul.f32 %v622, %v351
    %v624 = vmul.f32 %v621, %v352
    %v625 = vmul.f32 %v620, %v353
    %v626 = vmul.f32 %v619, %v354
    %627 = vrot.lane.b32.xlu0 %v604, 16
    %v628 = vpop.permute.xlu0 %627
    %629 = vrot.lane.b32.xlu0 %v605, 16
    %v630 = vpop.permute.xlu0 %629
    %631 = vrot.lane.b32.xlu0 %v606, 16
    %v632 = vpop.permute.xlu0 %631
    %633 = vrot.lane.b32.xlu0 %v607, 16
    %v634 = vpop.permute.xlu0 %633
    %v635 = vsel %vm367, %v632, %v634
    %v636 = vsel %vm367, %v630, %v632
    %v637 = vsel %vm367, %v628, %v630
    %v638 = vsel %vm367, %v634, %v628
    %v639 = vmul.f32 %v638, %v372
    %v640 = vmul.f32 %v637, %v373
    %v641 = vmul.f32 %v636, %v374
    %v642 = vmul.f32 %v635, %v375
    %643 = vrot.lane.b32.xlu0 %v604, 15
    %v644 = vpop.permute.xlu0 %643
    %645 = vrot.lane.b32.xlu0 %v605, 15
    %v646 = vpop.permute.xlu0 %645
    %647 = vrot.lane.b32.xlu0 %v606, 15
    %v648 = vpop.permute.xlu0 %647
    %649 = vrot.lane.b32.xlu0 %v607, 15
    %v650 = vpop.permute.xlu0 %649
    %v651 = vsel %vm388, %v648, %v650
    %v652 = vsel %vm388, %v646, %v648
    %v653 = vsel %vm388, %v644, %v646
    %v654 = vsel %vm388, %v650, %v644
    %v655 = vmul.f32 %v654, %v393
    %v656 = vmul.f32 %v653, %v394
    %v657 = vmul.f32 %v652, %v395
    %v658 = vmul.f32 %v651, %v396
    %659 = vrot.lane.b32.xlu0 %v604, 1
    %v660 = vpop.permute.xlu0 %659
    %661 = vrot.lane.b32.xlu0 %v605, 1
    %v662 = vpop.permute.xlu0 %661
    %663 = vrot.lane.b32.xlu0 %v606, 1
    %v664 = vpop.permute.xlu0 %663
    %665 = vrot.lane.b32.xlu0 %v607, 1
    %v666 = vpop.permute.xlu0 %665
    %v667 = vsel %vm409, %v664, %v666
    %v668 = vsel %vm409, %v662, %v664
    %v669 = vsel %vm409, %v660, %v662
    %v670 = vsel %vm409, %v666, %v660
    %v671 = vmul.f32 %v670, %v414
    %v672 = vmul.f32 %v669, %v415
    %v673 = vmul.f32 %v668, %v416
    %v674 = vmul.f32 %v667, %v417
    %675 = vrot.lane.b32.xlu0 %v604, 127
    %v676 = vpop.permute.xlu0 %675
    %677 = vrot.lane.b32.xlu0 %v605, 127
    %v678 = vpop.permute.xlu0 %677
    %679 = vrot.lane.b32.xlu0 %v606, 127
    %v680 = vpop.permute.xlu0 %679
    %681 = vrot.lane.b32.xlu0 %v607, 127
    %v682 = vpop.permute.xlu0 %681
    %v683 = vsel %vm430, %v680, %v682
    %v684 = vsel %vm430, %v678, %v680
    %v685 = vsel %vm430, %v676, %v678
    %v686 = vsel %vm430, %v682, %v676
    %v687 = vmul.f32 %v685, %v435
    %v688 = vmul.f32 %v684, %v436
    %v689 = vmul.f32 %v683, %v437
    %v690 = vmul.f32 %v686, %v438
    %691 = vrot.lane.b32.xlu0 %v604, 113
    %v692 = vpop.permute.xlu0 %691
    %693 = vrot.lane.b32.xlu0 %v605, 113
    %v694 = vpop.permute.xlu0 %693
    %695 = vrot.lane.b32.xlu0 %v606, 113
    %v696 = vpop.permute.xlu0 %695
    %697 = vrot.lane.b32.xlu0 %v607, 113
    %v698 = vpop.permute.xlu0 %697
    %v699 = vsel %vm451, %v696, %v698
    %v700 = vsel %vm451, %v694, %v696
    %v701 = vsel %vm451, %v692, %v694
    %v702 = vsel %vm451, %v698, %v692
    %v703 = vmul.f32 %v701, %v456
    %v704 = vmul.f32 %v700, %v457
    %v705 = vmul.f32 %v699, %v458
    %v706 = vmul.f32 %v702, %v459
    %707 = vrot.lane.b32.xlu0 %v604, 112
    %v708 = vpop.permute.xlu0 %707
    %709 = vrot.lane.b32.xlu0 %v605, 112
    %v710 = vpop.permute.xlu0 %709
    %711 = vrot.lane.b32.xlu0 %v606, 112
    %v712 = vpop.permute.xlu0 %711
    %713 = vrot.lane.b32.xlu0 %v607, 112
    %v714 = vpop.permute.xlu0 %713
    %v715 = vsel %vm472, %v712, %v714
    %v716 = vsel %vm472, %v710, %v712
    %v717 = vsel %vm472, %v708, %v710
    %v718 = vsel %vm472, %v714, %v708
    %v719 = vmul.f32 %v717, %v477
    %v720 = vmul.f32 %v716, %v478
    %v721 = vmul.f32 %v715, %v479
    %v722 = vmul.f32 %v718, %v480
    %723 = vrot.lane.b32.xlu0 %v604, 111
    %v724 = vpop.permute.xlu0 %723
    %725 = vrot.lane.b32.xlu0 %v605, 111
    %v726 = vpop.permute.xlu0 %725
    %727 = vrot.lane.b32.xlu0 %v606, 111
    %v728 = vpop.permute.xlu0 %727
    %729 = vrot.lane.b32.xlu0 %v607, 111
    %v730 = vpop.permute.xlu0 %729
    %v731 = vsel %vm493, %v728, %v730
    %v732 = vsel %vm493, %v726, %v728
    %v733 = vsel %vm493, %v724, %v726
    %v734 = vsel %vm493, %v730, %v724
    %v735 = vmul.f32 %v733, %v498
    %v736 = vmul.f32 %v732, %v499
    %v737 = vmul.f32 %v731, %v500
    %v738 = vmul.f32 %v734, %v501
    %v743 = vrot.slane %v639, 4
    %v744 = vrot.slane %v640, 4
    %v745 = vrot.slane %v641, 4
    %v746 = vrot.slane %v642, 4
    %v755 = vrot.slane %v671, 4
    %v756 = vrot.slane %v672, 4
    %v757 = vrot.slane %v673, 4
    %v758 = vrot.slane %v674, 4
    %v767 = vrot.slane %v687, 4
    %v768 = vrot.slane %v688, 4
    %v769 = vrot.slane %v689, 4
    %v770 = vrot.slane %v690, 4
    %v779 = vrot.slane %v719, 4
    %v780 = vrot.slane %v720, 4
    %v781 = vrot.slane %v721, 4
    %v782 = vrot.slane %v722, 4
    %v787 = vsel %vm328, %v623, %v743
    %v788 = vsel %vm328, %v624, %v744
    %v789 = vsel %vm328, %v625, %v745
    %v790 = vsel %vm328, %v626, %v746
    %v791 = vsel %vm328, %v655, %v755
    %v792 = vsel %vm328, %v656, %v756
    %v793 = vsel %vm328, %v657, %v757
    %v794 = vsel %vm328, %v658, %v758
    %v795 = vsel %vm328, %v604, %v767
    %v796 = vsel %vm328, %v605, %v768
    %v797 = vsel %vm328, %v606, %v769
    %v798 = vsel %vm328, %v607, %v770
    %v799 = vsel %vm328, %v703, %v779
    %v800 = vsel %vm328, %v704, %v780
    %v801 = vsel %vm328, %v705, %v781
    %v802 = vsel %vm328, %v706, %v782
    %vm803 = vcmask 293888
    %v805 = vsel %vm803, %v608, 0
    %v808 = vsel %vm328, %v735, 0
    %v811 = vsel %vm328, %v736, 0
    %v814 = vsel %vm328, %v737, 0
    %v817 = vsel %vm328, %v738, 0
    %819 = vmatpush.msra.mxu0 0.0
    %820 = vmatpush.msra.mxu0 0.0
    %821 = vmatpush.msra.mxu0 0.0
    %822 = vmatpush.msra.mxu0 0.0
    %823 = vmatpush.msra.mxu0 0.0
    %824 = vmatpush.msra.mxu0 0.0
    %825 = vmatpush.msra.mxu0 0.0
    %826 = vmatpush.msra.mxu0 0.0
    %827 = vmatpush.msra.mxu0 0.0
    %828 = vmatpush.msra.mxu0 0.0
    %829 = vmatpush.msra.mxu0 0.0
    %830 = vmatpush.msra.mxu0 %v808
    %831 = vmatpush.msra.mxu0 %v799
    %832 = vmatpush.msra.mxu0 %v795
    %833 = vmatpush.msra.mxu0 %v791
    %834 = vmatpush.msra.mxu0 %v787
    %835 = vmatmul.f32.gmra.mxu0 %v805
    %v836 = vpop.f32.mrf.mxu0
    %v837 = vadd.f32 0.0, %v836
    %838 = vdwg.mxu0
    %839 = vmatpush.msra.mxu0 0.0
    %840 = vmatpush.msra.mxu0 0.0
    %841 = vmatpush.msra.mxu0 0.0
    %842 = vmatpush.msra.mxu0 0.0
    %843 = vmatpush.msra.mxu0 0.0
    %844 = vmatpush.msra.mxu0 0.0
    %845 = vmatpush.msra.mxu0 0.0
    %846 = vmatpush.msra.mxu0 0.0
    %847 = vmatpush.msra.mxu0 0.0
    %848 = vmatpush.msra.mxu0 0.0
    %849 = vmatpush.msra.mxu0 0.0
    %850 = vmatpush.msra.mxu0 %v811
    %851 = vmatpush.msra.mxu0 %v800
    %852 = vmatpush.msra.mxu0 %v796
    %853 = vmatpush.msra.mxu0 %v792
    %854 = vmatpush.msra.mxu0 %v788
    %855 = vmatmul.f32.gmra.mxu0 %v805
    %v856 = vpop.f32.mrf.mxu0
    %v857 = vadd.f32 0.0, %v856
    %858 = vdwg.mxu0
    %859 = vmatpush.msra.mxu0 0.0
    %860 = vmatpush.msra.mxu0 0.0
    %861 = vmatpush.msra.mxu0 0.0
    %862 = vmatpush.msra.mxu0 0.0
    %863 = vmatpush.msra.mxu0 0.0
    %864 = vmatpush.msra.mxu0 0.0
    %865 = vmatpush.msra.mxu0 0.0
    %866 = vmatpush.msra.mxu0 0.0
    %867 = vmatpush.msra.mxu0 0.0
    %868 = vmatpush.msra.mxu0 0.0
    %869 = vmatpush.msra.mxu0 0.0
    %870 = vmatpush.msra.mxu0 %v814
    %871 = vmatpush.msra.mxu0 %v801
    %872 = vmatpush.msra.mxu0 %v797
    %873 = vmatpush.msra.mxu0 %v793
    %874 = vmatpush.msra.mxu0 %v789
    %875 = vmatmul.f32.gmra.mxu0 %v805
    %v876 = vpop.f32.mrf.mxu0
    %v877 = vadd.f32 0.0, %v876
    %878 = vdwg.mxu0
    %879 = vmatpush.msra.mxu0 0.0
    %880 = vmatpush.msra.mxu0 0.0
    %881 = vmatpush.msra.mxu0 0.0
    %882 = vmatpush.msra.mxu0 0.0
    %883 = vmatpush.msra.mxu0 0.0
    %884 = vmatpush.msra.mxu0 0.0
    %885 = vmatpush.msra.mxu0 0.0
    %886 = vmatpush.msra.mxu0 0.0
    %887 = vmatpush.msra.mxu0 0.0
    %888 = vmatpush.msra.mxu0 0.0
    %889 = vmatpush.msra.mxu0 0.0
    %890 = vmatpush.msra.mxu0 %v817
    %891 = vmatpush.msra.mxu0 %v802
    %892 = vmatpush.msra.mxu0 %v798
    %893 = vmatpush.msra.mxu0 %v794
    %894 = vmatpush.msra.mxu0 %v790
    %895 = vmatmul.f32.gmra.mxu0 %v805
    %v896 = vpop.f32.mrf.mxu0
    %v897 = vadd.f32 0.0, %v896
    %898 = vdwg.mxu0
    %900 = vset.pattern.permute.xlu0 0
    %901 = vperm.xlu0 %900, %v609
    %v902 = vpop.permute.xlu0 %901
    %v904 = vmul.f32 %v837, %v902
    %v905 = vmul.f32 %v857, %v902
    %v906 = vmul.f32 %v877, %v902
    %v907 = vmul.f32 %v897, %v902
    %909 = vset.pattern.permute.xlu0 0
    %910 = vperm.xlu0 %909, %v610
    %v911 = vpop.permute.xlu0 %910
    %v913 = vadd.f32 %v904, %v911
    %v914 = vadd.f32 %v905, %v911
    %v915 = vadd.f32 %v906, %v911
    %v916 = vadd.f32 %v907, %v911
    %v921 = vrot.slane %v914, 4
    %v922 = vrot.slane %v916, 4
    %v923 = vsel %vm328, %v913, %v921
    %v924 = vsel %vm328, %v915, %v922
    %927 = vst [vmem:[#allocation8] sm:$0xff] %v923
    %928 = vst [vmem:[#allocation8 + $0x8] sm:$0xff] %v924
    // Predicated region
    $region62: #{tpu_custom_call.1} parent=1 // pred_check
      _
    $region63: #{tpu_custom_call.1} parent=1 // pred_check_branch
      %930 = sbr.rel (0) target = $region65
    $region64: #{tpu_custom_call.1} parent=1 // pred_region
      %932 = vsyncadd [#allocation4], 0
      %s934 = sshll.u32 [#allocation8], 4
      %s935 = int_to_ptr.vmem [resolvable:$true] %s934
      %s936 = sshll.u32 %s12, 4
      %s937 = int_to_ptr.hbm [resolvable:$true] %s936
      %939 = dma.vmem_to_hbm [thread:$0]  %s935, 256, %s937, [#allocation4]
    $region65: #{tpu_custom_call.1} parent=1 // pred_fallthru
      _
    // Predicated region
    $region66: #{tpu_custom_call.1} parent=1 // pred_check
      _
    $region67: #{tpu_custom_call.1} parent=1 // pred_check_branch
      %941 = sbr.rel (0) target = $region69
    $region68: #{tpu_custom_call.1} parent=1 // pred_region
      %943 = dma.done [#allocation4], 256
    $region69: #{tpu_custom_call.1} parent=1 // pred_fallthru
      _
    %944 = vsyncpa [#allocation3], 1
    %945 = vsyncpa [#allocation6], 1
    %946 = vsyncpa [#allocation4], 1

</llo_original>
